<compile_context>
chip_gen: v5e
topology: v5e:2x2
jax: 0.10.0
libtpu: 0.0.40
codegen_flags: <defaults>
</compile_context>

<pallas_src>
import functools

import jax
import jax.numpy as jnp
from jax.experimental import pallas as pl
from jax.experimental.pallas import tpu as pltpu


_TN_CAP = 2048          # phase-1 N-tile cap (fits easily in 32 MiB scoped VMEM)
_TR_CAP = 2048          # phase-2 row-tile cap
_VMEM_LIMIT = 32 * 1024 * 1024
_FUSED_BYTES_CAP = 12 * 1024 * 1024   # conservative for v7x's 64 MiB VMEM


def _round_up(x, m):
    return ((x + m - 1) // m) * m


def _pick_tile(n, cap, quantum=8):
    """Largest multiple of `quantum` dividing n that is <= cap (else n)."""
    if n <= cap:
        return n
    t = (cap // quantum) * quantum
    while t >= quantum:
        if n % t == 0:
            return t
        t -= quantum
    return n   # only reachable for awkward (n, quantum) combos; see wrapper


def _selector(m_views, tn):
    """(M, M*TN) 0/1 matrix: sel[m, j] = 1 iff row j of the flattened slab
    belongs to view m.  Host-precomputed, VMEM-resident in the kernels."""
    view = jnp.arange(m_views, dtype=jnp.int32)[:, None]
    row_view = (jnp.arange(m_views * tn, dtype=jnp.int32) // tn)[None, :]
    return (view == row_view).astype(jnp.float32)


# ---------------------------------------------------------------------------
# fused single-pass kernel (x fully VMEM-resident): scores + softmax + combine
# ---------------------------------------------------------------------------
def _fused_kernel(x_ref, wt_ref, b_ref, att_ref, sel_ref, o_ref, *, inv_n):
    # x_ref: (M, Np, D)  wt_ref: (D, D)  b_ref: (1, D)  att_ref: (1, D)
    # sel_ref: (M, M*Np) o_ref: (Np, D)
    M, n_pad, D = x_ref.shape

    # One MXU call over the whole (M*Np, D) slab (Np is a multiple of 8, so
    # the flatten is layout-free in VMEM).
    x_flat = x_ref[...].reshape(M * n_pad, D)
    h = jnp.tanh(
        jnp.dot(x_flat, wt_ref[...], preferred_element_type=jnp.float32)
        + b_ref[...])
    # Per-view row sums on the MXU: (M, M*Np) @ (M*Np, D) -> (M, D).
    sp = jnp.dot(sel_ref[...], h, preferred_element_type=jnp.float32)
    # att-dot as an elementwise mul + lane reduction (avoids a 1-column MXU
    # output); divide by the REAL N (padding shifts all scores equally, and
    # softmax is shift-invariant, so no further correction is needed).
    s = jnp.sum(sp * att_ref[...], axis=-1, keepdims=True) * inv_n   # (M, 1)

    # Softmax over the M views, fully unrolled on (1,1) slices (M is tiny).
    mmax = s[0:1, :]
    for m in range(1, M):
        mmax = jnp.maximum(mmax, s[m:m + 1, :])
    es = [jnp.exp(s[m:m + 1, :] - mmax) for m in range(M)]
    denom = es[0]
    for m in range(1, M):
        denom = denom + es[m]
    inv = 1.0 / denom                                   # (1, 1)

    # z = sum_m beta[m] * x[m]; beta[m] is broadcast lane-wise to (1, D) and
    # then sublane-wise against the (Np, D) view (bias-style broadcasts).
    zero_row = jnp.zeros((1, D), jnp.float32)
    z = None
    for m in range(M):
        beta_row = es[m] * inv + zero_row               # (1, D)
        term = x_ref[m].astype(jnp.float32) * beta_row  # (Np, D)
        z = term if z is None else z + term
    o_ref[...] = z.astype(o_ref.dtype)


# ---------------------------------------------------------------------------
# phase 1 (two-phase path): per-view row-sum partials  sp[m, :] per N tile
# ---------------------------------------------------------------------------
def _scores_kernel(x_ref, wt_ref, b_ref, sel_ref, o_ref):
    # x_ref: (M, TN, D)   wt_ref: (D, D)   b_ref: (1, D)
    # sel_ref: (M, M*TN)  o_ref: (1, M, D)  (per-tile partial -> "parallel")
    M, TN, D = x_ref.shape
    x_flat = x_ref[...].reshape(M * TN, D)          # layout-free: TN % 8 == 0
    h = jnp.tanh(
        jnp.dot(x_flat, wt_ref[...], preferred_element_type=jnp.float32)
        + b_ref[...])
    sp = jnp.dot(sel_ref[...], h, preferred_element_type=jnp.float32)  # (M, D)
    o_ref[...] = sp.reshape(1, M, D)


# ---------------------------------------------------------------------------
# phase 2 (two-phase path): z = sum_m beta[m] * x[m]  (lane-dense streaming)
# ---------------------------------------------------------------------------
def _combine_kernel(beta_ref, x_ref, o_ref):
    # beta_ref: (M,) f32 scalars in SMEM
    # x_ref:    (M, TR, C) tile of the (re-folded) embeds
    # o_ref:    (TR, C)
    M = x_ref.shape[0]
    # Upcast after load so bf16 inputs stay bf16 on the wire but all vector
    # math is f32 (v5e has no bf16 VALU).
    z = x_ref[0].astype(jnp.float32) * beta_ref[0]
    for m in range(1, M):
        z = z + x_ref[m].astype(jnp.float32) * beta_ref[m]
    o_ref[...] = z.astype(o_ref.dtype)


# ---------------------------------------------------------------------------
# wrapper
# ---------------------------------------------------------------------------
def attention_forward(x, w, b, att, use_fused=None):
    """x: (M, N, D) stacked embeds (f32 or bf16); w: (D, D) PyTorch-layout fc
    weight (out, in); b: (D,) fc bias; att: (1, D) attention vector."""
    M, N, D = x.shape
    x_itemsize = jnp.dtype(x.dtype).itemsize
    wt = jnp.asarray(w, jnp.float32).T                # (D_in, D_out)
    b2 = jnp.asarray(b, jnp.float32).reshape(1, D)
    att2 = jnp.asarray(att, jnp.float32).reshape(1, D)

    # ---- path selection + N padding (bounded tiles, no tn=N blow-up) -----
    n8 = _round_up(N, 8)
    # fused footprint estimate: x block + lane-padded h intermediates
    fused_bytes = M * n8 * 4 * (D + 3 * _round_up(D, 128))
    if use_fused is None:
        use_fused = fused_bytes <= _FUSED_BYTES_CAP
    if use_fused:
        n_pad = n8
    else:
        n_pad = n8 if n8 <= _TN_CAP else _round_up(N, 512)
    if n_pad != N:
        # zero-padded rows shift every view's score by the same constant
        # (att . tanh(b) per row), which softmax ignores; output rows are
        # sliced away below.
        x = jnp.pad(x, ((0, 0), (0, n_pad - N), (0, 0)))

    # ======================= fused single-pass path ========================
    if use_fused:
        sel = _selector(M, n_pad)
        kernel = functools.partial(_fused_kernel, inv_n=1.0 / N)
        z = pl.pallas_call(
            kernel,
            out_shape=jax.ShapeDtypeStruct((n_pad, D), x.dtype),
            grid=(1,),
            in_specs=[
                pl.BlockSpec((M, n_pad, D), lambda i: (0, 0, 0)),
                pl.BlockSpec((D, D), lambda i: (0, 0)),
                pl.BlockSpec((1, D), lambda i: (0, 0)),
                pl.BlockSpec((1, D), lambda i: (0, 0)),
                pl.BlockSpec((M, M * n_pad), lambda i: (0, 0)),
            ],
            out_specs=pl.BlockSpec((n_pad, D), lambda i: (0, 0)),
            compiler_params=pltpu.CompilerParams(
                vmem_limit_bytes=_VMEM_LIMIT),
            cost_estimate=pl.CostEstimate(
                flops=2 * M * n_pad * D * D + 2 * M * M * n_pad * D
                      + 4 * M * n_pad * D,
                transcendentals=M * n_pad * D + M,
                bytes_accessed=M * n_pad * D * x_itemsize
                               + n_pad * D * x_itemsize
                               + (D * D + 2 * D + M * M * n_pad) * 4),
        )(x, wt, b2, att2, sel)
        return z[:N] if n_pad != N else z

    # ========================== two-phase path =============================
    # ---------------- phase 1: per-view row-sum partials, tiled over N ----
    tn = _pick_tile(n_pad, cap=_TN_CAP, quantum=512)
    num_tiles = n_pad // tn
    sel = _selector(M, tn)
    partials = pl.pallas_call(
        _scores_kernel,
        out_shape=jax.ShapeDtypeStruct((num_tiles, M, D), jnp.float32),
        grid=(num_tiles,),
        in_specs=[
            pl.BlockSpec((M, tn, D), lambda i: (0, i, 0)),   # x tile
            pl.BlockSpec((D, D), lambda i: (0, 0)),          # W^T (resident)
            pl.BlockSpec((1, D), lambda i: (0, 0)),          # bias
            pl.BlockSpec((M, M * tn), lambda i: (0, 0)),     # selector (resident)
        ],
        out_specs=pl.BlockSpec((1, M, D), lambda i: (i, 0, 0)),  # per-tile partial
        compiler_params=pltpu.CompilerParams(
            dimension_semantics=("parallel",),               # megacore-friendly
            vmem_limit_bytes=_VMEM_LIMIT),
        cost_estimate=pl.CostEstimate(
            flops=2 * M * n_pad * D * D + 2 * M * M * n_pad * D,
            transcendentals=M * n_pad * D,
            bytes_accessed=M * n_pad * D * x_itemsize
                           + (D * D + D + M * M * tn) * 4
                           + num_tiles * M * D * 4),
    )(x, wt, b2, sel)

    # ------------- glue: fold partials, att-dot, /N, softmax (M scalars) ---
    sp_sum = jnp.sum(partials, axis=0)                       # (M, D)
    scores = (sp_sum @ att2.reshape(D)) / N                  # (M,)
    beta = jax.nn.softmax(scores).astype(jnp.float32)        # (M,)

    # ------------- phase 2: beta-weighted combine, tiled & lane-dense ------
    if (n_pad * D) % 128 == 0:
        rows, cols = (n_pad * D) // 128, 128   # fold to unmasked-vst layout
    else:
        rows, cols = n_pad, D                  # fallback: native layout
    x_c = x.reshape(M, rows, cols)
    tr = _pick_tile(rows, cap=_TR_CAP, quantum=8)
    n_steps = rows // tr
    x_spec = pl.BlockSpec((M, tr, cols), lambda i: (0, i, 0))
    if n_steps >= 4:
        # deeper pipeline only pays off (and only allocates) on long grids
        x_spec = pl.BlockSpec((M, tr, cols), lambda i: (0, i, 0),
                              pipeline_mode=pl.Buffered(3))
    z = pl.pallas_call(
        _combine_kernel,
        out_shape=jax.ShapeDtypeStruct((rows, cols), x.dtype),
        grid=(n_steps,),
        in_specs=[
            pl.BlockSpec(memory_space=pltpu.MemorySpace.SMEM),  # beta scalars
            x_spec,                                             # x tile
        ],
        out_specs=pl.BlockSpec((tr, cols), lambda i: (i, 0)),
        compiler_params=pltpu.CompilerParams(
            dimension_semantics=("parallel",),
            vmem_limit_bytes=_VMEM_LIMIT),
        cost_estimate=pl.CostEstimate(
            flops=2 * M * rows * cols,
            transcendentals=0,
            bytes_accessed=(M + 1) * rows * cols * x_itemsize + M * 4),
    )(beta, x_c)
    z = z.reshape(n_pad, D)
    return z[:N] if n_pad != N else z


def attention_reference(x, w, b, att):
    """Pure-JAX mirror of the PyTorch forward, for verification."""
    scores = []
    for m in range(x.shape[0]):
        h = jnp.tanh(x[m] @ w.T + b)
        sp = jnp.mean(h, axis=0)
        scores.append(jnp.dot(att[0], sp))
    beta = jax.nn.softmax(jnp.stack(scores))
    z = jnp.zeros_like(x[0])
    for m in range(x.shape[0]):
        z = z + x[m] * beta[m]
    return z


if __name__ == "__main__":
    def make_inputs(key, M, N, D):
        k_x, k_w, k_b, k_a = jax.random.split(key, 4)
        # stacked embeds (list of M tensors (N, D) in the PyTorch module)
        x = jax.random.normal(k_x, (M, N, D), dtype=jnp.float32)
        # fc: Linear(D, D), xavier_normal_(gain=1.414) on weight
        w_std = 1.414 * (2.0 / (D + D)) ** 0.5
        w = w_std * jax.random.normal(k_w, (D, D), dtype=jnp.float32)
        # default PyTorch Linear bias init: U(-1/sqrt(fan_in), 1/sqrt(fan_in))
        bound = 1.0 / (D ** 0.5)
        b = jax.random.uniform(k_b, (D,), minval=-bound, maxval=bound,
                               dtype=jnp.float32)
        # att: (1, D), xavier_normal_(gain=1.414)
        a_std = 1.414 * (2.0 / (1 + D)) ** 0.5
        att = a_std * jax.random.normal(k_a, (1, D), dtype=jnp.float32)
        return x, w, b, att

    checks = [
        (3, 8, 32, None),       # tiny  -> fused single-pass fast path
        (3, 10, 32, None),      # N % 8 != 0 -> padding path (fused)
        (3, 4096, 32, False),   # forced two-phase tiled path (2 N tiles)
    ]
    keys = jax.random.split(jax.random.PRNGKey(0), len(checks))
    for kk, (M, N, D, use_fused) in zip(keys, checks):
        x, w, b, att = make_inputs(kk, M, N, D)
        out = jax.block_until_ready(
            attention_forward(x, w, b, att, use_fused=use_fused))
        ref = attention_reference(x, w, b, att)
        assert out.shape == (N, D), (out.shape, (N, D))
        err = float(jnp.max(jnp.abs(out - ref)))
        assert jnp.allclose(out, ref, atol=1e-3, rtol=1e-3), (M, N, D, err)

    print("KERNEL_OK")
</pallas_src>

<mosaic_0001>
module attributes {stable_mosaic.version = 11 : i64} {
  func.func @_fused_kernel(%arg0: i32, %arg1: memref<3x8x32xf32, #tpu.memory_space<vmem>>, %arg2: memref<32x32xf32, #tpu.memory_space<vmem>>, %arg3: memref<1x32xf32, #tpu.memory_space<vmem>>, %arg4: memref<1x32xf32, #tpu.memory_space<vmem>>, %arg5: memref<3x24xf32, #tpu.memory_space<vmem>>, %arg6: memref<8x32xf32, #tpu.memory_space<vmem>>) attributes {dimension_semantics = [#tpu.dimension_semantics<arbitrary>], iteration_bounds = array<i64: 1>, scalar_prefetch = 0 : i64, scratch_operands = 0 : i64, tpu.core_type = #tpu.core_type<tc>, window_params = [{pipeline_mode = #tpu.pipeline_mode<synchronous>, transform_indices = @transform_0, window_bounds = array<i64: 3, 8, 32>}, {pipeline_mode = #tpu.pipeline_mode<synchronous>, transform_indices = @transform_1, window_bounds = array<i64: 32, 32>}, {pipeline_mode = #tpu.pipeline_mode<synchronous>, transform_indices = @transform_2, window_bounds = array<i64: 1, 32>}, {pipeline_mode = #tpu.pipeline_mode<synchronous>, transform_indices = @transform_3, window_bounds = array<i64: 1, 32>}, {pipeline_mode = #tpu.pipeline_mode<synchronous>, transform_indices = @transform_4, window_bounds = array<i64: 3, 24>}, {pipeline_mode = #tpu.pipeline_mode<synchronous>, transform_indices = @transform_5, window_bounds = array<i64: 8, 32>}]} {
    %c0 = arith.constant 0 : index
    %c0_0 = arith.constant 0 : index
    %c0_1 = arith.constant 0 : index
    %0 = vector.load %arg1[%c0, %c0_0, %c0_1] : memref<3x8x32xf32, #tpu.memory_space<vmem>>, vector<3x8x32xf32>
    %1 = vector.shape_cast %0 : vector<3x8x32xf32> to vector<24x32xf32>
    %c0_2 = arith.constant 0 : index
    %c0_3 = arith.constant 0 : index
    %2 = vector.load %arg2[%c0_2, %c0_3] : memref<32x32xf32, #tpu.memory_space<vmem>>, vector<32x32xf32>
    %cst = arith.constant dense<0.000000e+00> : vector<24x32xf32>
    %3 = tpu.matmul %1, %2, %cst {dimension_numbers = #tpu.dot_dimension_numbers<[1], [0], [0], [1], [0, 0, 1, 1], [], []>} : vector<24x32xf32>, vector<32x32xf32>, vector<24x32xf32> -> vector<24x32xf32>
    %c0_4 = arith.constant 0 : index
    %c0_5 = arith.constant 0 : index
    %4 = vector.load %arg3[%c0_4, %c0_5] : memref<1x32xf32, #tpu.memory_space<vmem>>, vector<1x32xf32>
    %5 = vector.broadcast %4 : vector<1x32xf32> to vector<24x32xf32>
    %6 = arith.addf %3, %5 : vector<24x32xf32>
    %7 = math.tanh %6 : vector<24x32xf32>
    %c0_6 = arith.constant 0 : index
    %c0_7 = arith.constant 0 : index
    %8 = vector.load %arg5[%c0_6, %c0_7] : memref<3x24xf32, #tpu.memory_space<vmem>>, vector<3x24xf32>
    %cst_8 = arith.constant dense<0.000000e+00> : vector<3x32xf32>
    %9 = tpu.matmul %8, %7, %cst_8 {dimension_numbers = #tpu.dot_dimension_numbers<[1], [0], [0], [1], [0, 0, 1, 1], [], []>} : vector<3x24xf32>, vector<24x32xf32>, vector<3x32xf32> -> vector<3x32xf32>
    %c0_9 = arith.constant 0 : index
    %c0_10 = arith.constant 0 : index
    %10 = vector.load %arg4[%c0_9, %c0_10] : memref<1x32xf32, #tpu.memory_space<vmem>>, vector<1x32xf32>
    %11 = vector.broadcast %10 : vector<1x32xf32> to vector<3x32xf32>
    %12 = arith.mulf %9, %11 : vector<3x32xf32>
    %cst_11 = arith.constant dense<0.000000e+00> : vector<3xf32>
    %13 = vector.multi_reduction <add>, %12, %cst_11 [1] : vector<3x32xf32> to vector<3xf32>
    %14 = vector.shape_cast %13 : vector<3xf32> to vector<3x1xf32>
    %cst_12 = arith.constant 1.250000e-01 : f32
    %15 = vector.broadcast %cst_12 : f32 to vector<3x1xf32>
    %16 = arith.mulf %14, %15 : vector<3x1xf32>
    %17 = vector.extract_strided_slice %16 {offsets = [0, 0], sizes = [1, 1], strides = [1, 1]} : vector<3x1xf32> to vector<1x1xf32>
    %18 = vector.extract_strided_slice %16 {offsets = [1, 0], sizes = [1, 1], strides = [1, 1]} : vector<3x1xf32> to vector<1x1xf32>
    %19 = arith.maximumf %17, %18 : vector<1x1xf32>
    %20 = vector.extract_strided_slice %16 {offsets = [2, 0], sizes = [1, 1], strides = [1, 1]} : vector<3x1xf32> to vector<1x1xf32>
    %21 = arith.maximumf %19, %20 : vector<1x1xf32>
    %22 = vector.extract_strided_slice %16 {offsets = [0, 0], sizes = [1, 1], strides = [1, 1]} : vector<3x1xf32> to vector<1x1xf32>
    %23 = arith.subf %22, %21 : vector<1x1xf32>
    %24 = math.exp %23 : vector<1x1xf32>
    %25 = vector.extract_strided_slice %16 {offsets = [1, 0], sizes = [1, 1], strides = [1, 1]} : vector<3x1xf32> to vector<1x1xf32>
    %26 = arith.subf %25, %21 : vector<1x1xf32>
    %27 = math.exp %26 : vector<1x1xf32>
    %28 = vector.extract_strided_slice %16 {offsets = [2, 0], sizes = [1, 1], strides = [1, 1]} : vector<3x1xf32> to vector<1x1xf32>
    %29 = arith.subf %28, %21 : vector<1x1xf32>
    %30 = math.exp %29 : vector<1x1xf32>
    %31 = arith.addf %24, %27 : vector<1x1xf32>
    %32 = arith.addf %31, %30 : vector<1x1xf32>
    %cst_13 = arith.constant 1.000000e+00 : f32
    %33 = vector.broadcast %cst_13 : f32 to vector<1x1xf32>
    %34 = arith.divf %33, %32 : vector<1x1xf32>
    %cst_14 = arith.constant 0.000000e+00 : f32
    %35 = vector.broadcast %cst_14 : f32 to vector<1x32xf32>
    %36 = arith.mulf %24, %34 : vector<1x1xf32>
    %37 = vector.broadcast %36 : vector<1x1xf32> to vector<1x32xf32>
    %38 = arith.addf %37, %35 : vector<1x32xf32>
    %c0_15 = arith.constant 0 : index
    %c0_16 = arith.constant 0 : index
    %c0_17 = arith.constant 0 : index
    %39 = vector.load %arg1[%c0_15, %c0_16, %c0_17] : memref<3x8x32xf32, #tpu.memory_space<vmem>>, vector<1x8x32xf32>
    %40 = vector.shape_cast %39 : vector<1x8x32xf32> to vector<8x32xf32>
    %41 = vector.broadcast %38 : vector<1x32xf32> to vector<8x32xf32>
    %42 = arith.mulf %40, %41 : vector<8x32xf32>
    %43 = arith.mulf %27, %34 : vector<1x1xf32>
    %44 = vector.broadcast %43 : vector<1x1xf32> to vector<1x32xf32>
    %45 = arith.addf %44, %35 : vector<1x32xf32>
    %c1 = arith.constant 1 : index
    %c0_18 = arith.constant 0 : index
    %c0_19 = arith.constant 0 : index
    %46 = vector.load %arg1[%c1, %c0_18, %c0_19] : memref<3x8x32xf32, #tpu.memory_space<vmem>>, vector<1x8x32xf32>
    %47 = vector.shape_cast %46 : vector<1x8x32xf32> to vector<8x32xf32>
    %48 = vector.broadcast %45 : vector<1x32xf32> to vector<8x32xf32>
    %49 = arith.mulf %47, %48 : vector<8x32xf32>
    %50 = arith.addf %42, %49 : vector<8x32xf32>
    %51 = arith.mulf %30, %34 : vector<1x1xf32>
    %52 = vector.broadcast %51 : vector<1x1xf32> to vector<1x32xf32>
    %53 = arith.addf %52, %35 : vector<1x32xf32>
    %c2 = arith.constant 2 : index
    %c0_20 = arith.constant 0 : index
    %c0_21 = arith.constant 0 : index
    %54 = vector.load %arg1[%c2, %c0_20, %c0_21] : memref<3x8x32xf32, #tpu.memory_space<vmem>>, vector<1x8x32xf32>
    %55 = vector.shape_cast %54 : vector<1x8x32xf32> to vector<8x32xf32>
    %56 = vector.broadcast %53 : vector<1x32xf32> to vector<8x32xf32>
    %57 = arith.mulf %55, %56 : vector<8x32xf32>
    %58 = arith.addf %50, %57 : vector<8x32xf32>
    %c0_22 = arith.constant 0 : index
    %c0_23 = arith.constant 0 : index
    %59 = vector.load %arg6[%c0_22, %c0_23] : memref<8x32xf32, #tpu.memory_space<vmem>>, vector<8x32xf32>
    tpu.vector_store %arg6[%c0_22, %c0_23], %58 {strides = array<i32>} : memref<8x32xf32, #tpu.memory_space<vmem>>, vector<8x32xf32>,
    return
  }
  func.func @transform_0(%arg0: i32) -> (i32, i32, i32) {
    %c0_i32 = arith.constant 0 : i32
    %c0_i32_0 = arith.constant 0 : i32
    %c0_i32_1 = arith.constant 0 : i32
    %c0_i32_2 = arith.constant 0 : i32
    return %c0_i32, %c0_i32_0, %c0_i32_1 : i32, i32, i32
  }
  func.func @transform_1(%arg0: i32) -> (i32, i32) {
    %c0_i32 = arith.constant 0 : i32
    %c0_i32_0 = arith.constant 0 : i32
    %c0_i32_1 = arith.constant 0 : i32
    return %c0_i32, %c0_i32_0 : i32, i32
  }
  func.func @transform_2(%arg0: i32) -> (i32, i32) {
    %c0_i32 = arith.constant 0 : i32
    %c0_i32_0 = arith.constant 0 : i32
    %c0_i32_1 = arith.constant 0 : i32
    return %c0_i32, %c0_i32_0 : i32, i32
  }
  func.func @transform_3(%arg0: i32) -> (i32, i32) {
    %c0_i32 = arith.constant 0 : i32
    %c0_i32_0 = arith.constant 0 : i32
    %c0_i32_1 = arith.constant 0 : i32
    return %c0_i32, %c0_i32_0 : i32, i32
  }
  func.func @transform_4(%arg0: i32) -> (i32, i32) {
    %c0_i32 = arith.constant 0 : i32
    %c0_i32_0 = arith.constant 0 : i32
    %c0_i32_1 = arith.constant 0 : i32
    return %c0_i32, %c0_i32_0 : i32, i32
  }
  func.func @transform_5(%arg0: i32) -> (i32, i32) {
    %c0_i32 = arith.constant 0 : i32
    %c0_i32_0 = arith.constant 0 : i32
    %c0_i32_1 = arith.constant 0 : i32
    return %c0_i32, %c0_i32_0 : i32, i32
  }
}

</mosaic_0001>

<llo_original>
// kernel: tpu_custom_call.1
$region0: #{tpu_custom_call.1}
  #allocation0 [shape = 'u32[]', space=smem, size = 0x4, offset = 0x4, fixed_abs, tag = 'smem constant byte address 0x4 - core index']
  #allocation1 [shape = 'u32[72,128]{1,0:T(1,128)}', space=vmem, size = 0x9000, scoped, tag = 'internal scratch']
  %s0 = inlined_call_operand.hbm [shape: f32[3,8,32], index: 0, kind: input, shape index: {}]
  %s1 = inlined_call_operand.hbm [shape: f32[32,32], index: 1, kind: input, shape index: {}]
  %s2 = inlined_call_operand.vmem [shape: f32[1,32], index: 2, kind: input, shape index: {}]
  %s3 = inlined_call_operand.vmem [shape: f32[1,32], index: 3, kind: input, shape index: {}]
  %s4 = inlined_call_operand.hbm [shape: f32[3,24], index: 4, kind: input, shape index: {}]
  %s5 = inlined_call_operand.hbm [shape: f32[8,32], index: 5, kind: output, shape index: {}]
  %s6 = sld [smem:[#allocation0]]
  $region42: #{tpu_custom_call.1} parent=0
    _
  %s8 = ssub.s32 1, %s6
  %s9 = scalar_select 0, %s8, %s6
  $region1: #{tpu_custom_call.1} parent=0
    #allocation2 [shape = 'u8[12288]{0}', space=vmem, size = 0x3000, scoped, tag = 'input window, operand 0, single buffered']
    #allocation3 [shape = 's32[1]{0}', space=sflag, size = 0x4, scoped, tag = 'scoped memory for tpu_custom_call.1']
    #allocation4 [shape = 's32[1]{0}', space=sflag, size = 0x4, scoped, tag = 'scoped memory for tpu_custom_call.1']
    #allocation5 [shape = 'u8[16384]{0}', space=vmem, size = 0x4000, scoped, tag = 'input window, operand 1, single buffered']
    #allocation6 [shape = 's32[1]{0}', space=sflag, size = 0x4, scoped, tag = 'scoped memory for tpu_custom_call.1']
    #allocation7 [shape = 'u8[2048]{0}', space=vmem, size = 0x800, scoped, tag = 'input window, operand 4, single buffered']
    #allocation8 [shape = 'u8[4096]{0}', space=vmem, size = 0x1000, scoped, tag = 'output window, operand 0, single buffered']
    %10 = vsyncpa [#allocation3], 0
    %11 = vsyncpa [#allocation6], 0
    %12 = vsyncpa [#allocation4], 0
    // Predicated region
    $region2: #{tpu_custom_call.1} parent=1 // pred_check
      _
    $region3: #{tpu_custom_call.1} parent=1 // pred_check_branch
      %14 = sbr.rel (0) target = $region5
    $region4: #{tpu_custom_call.1} parent=1 // pred_region
      %16 = vsyncadd [#allocation3], 0
      %s17 = sshll.u32 %s0, 4
      %s18 = int_to_ptr.hbm [resolvable:$true] %s17
      %s19 = sshll.u32 [#allocation2], 4
      %s20 = int_to_ptr.vmem [resolvable:$true] %s19
      %25 = dma.hbm_to_vmem [thread:$0]  %s18, 384, %s20, [#allocation3], 128, 128, 8
    $region5: #{tpu_custom_call.1} parent=1 // pred_fallthru
      _
    // Predicated region
    $region6: #{tpu_custom_call.1} parent=1 // pred_check
      _
    $region7: #{tpu_custom_call.1} parent=1 // pred_check_branch
      %27 = sbr.rel (0) target = $region9
    $region8: #{tpu_custom_call.1} parent=1 // pred_region
      %29 = vsyncadd [#allocation6], 0
      %s30 = sshll.u32 %s1, 4
      %s31 = int_to_ptr.hbm [resolvable:$true] %s30
      %s32 = sshll.u32 [#allocation5], 4
      %s33 = int_to_ptr.vmem [resolvable:$true] %s32
      %38 = dma.hbm_to_vmem [thread:$0]  %s31, 512, %s33, [#allocation6], 128, 128, 8
    $region9: #{tpu_custom_call.1} parent=1 // pred_fallthru
      _
    // Predicated region
    $region10: #{tpu_custom_call.1} parent=1 // pred_check
      _
    $region11: #{tpu_custom_call.1} parent=1 // pred_check_branch
      %40 = sbr.rel (0) target = $region13
    $region12: #{tpu_custom_call.1} parent=1 // pred_region
      _
    $region13: #{tpu_custom_call.1} parent=1 // pred_fallthru
      _
    // Predicated region
    $region14: #{tpu_custom_call.1} parent=1 // pred_check
      _
    $region15: #{tpu_custom_call.1} parent=1 // pred_check_branch
      %42 = sbr.rel (0) target = $region17
    $region16: #{tpu_custom_call.1} parent=1 // pred_region
      _
    $region17: #{tpu_custom_call.1} parent=1 // pred_fallthru
      _
    // Predicated region
    $region18: #{tpu_custom_call.1} parent=1 // pred_check
      _
    $region19: #{tpu_custom_call.1} parent=1 // pred_check_branch
      %44 = sbr.rel (0) target = $region21
    $region20: #{tpu_custom_call.1} parent=1 // pred_region
      %46 = vsyncadd [#allocation6], 0
      %s48 = sshll.u32 %s4, 4
      %s49 = int_to_ptr.hbm [resolvable:$true] %s48
      %s50 = sshll.u32 [#allocation7], 4
      %s51 = int_to_ptr.vmem [resolvable:$true] %s50
      %53 = dma.hbm_to_vmem [thread:$0]  %s49, 64, %s51, [#allocation6]
    $region21: #{tpu_custom_call.1} parent=1 // pred_fallthru
      _
    // Predicated region
    $region22: #{tpu_custom_call.1} parent=1 // pred_check
      _
    $region23: #{tpu_custom_call.1} parent=1 // pred_check_branch
      %55 = sbr.rel (0) target = $region25
    $region24: #{tpu_custom_call.1} parent=1 // pred_region
      %57 = dma.done [#allocation3], 384
    $region25: #{tpu_custom_call.1} parent=1 // pred_fallthru
      _
    // Predicated region
    $region26: #{tpu_custom_call.1} parent=1 // pred_check
      _
    $region27: #{tpu_custom_call.1} parent=1 // pred_check_branch
      %59 = sbr.rel (0) target = $region29
    $region28: #{tpu_custom_call.1} parent=1 // pred_region
      %61 = dma.done [#allocation6], 512
    $region29: #{tpu_custom_call.1} parent=1 // pred_fallthru
      _
    // Predicated region
    $region30: #{tpu_custom_call.1} parent=1 // pred_check
      _
    $region31: #{tpu_custom_call.1} parent=1 // pred_check_branch
      %63 = sbr.rel (0) target = $region33
    $region32: #{tpu_custom_call.1} parent=1 // pred_region
      %65 = dma.done [#allocation6], 64
    $region33: #{tpu_custom_call.1} parent=1 // pred_fallthru
      _
    %v66 = vld [vmem:[#allocation2] sm:$0xff]
    %v67 = vld [vmem:[#allocation2 + $0x8] sm:$0xff]
    %v68 = vld [vmem:[#allocation2 + $0x10] sm:$0xff]
    %v69 = vld [vmem:[#allocation5] sm:$0xff]
    %v70 = vld [vmem:[#allocation5 + $0x8] sm:$0xff]
    %v71 = vld [vmem:[#allocation5 + $0x10] sm:$0xff]
    %v72 = vld [vmem:[#allocation5 + $0x18] sm:$0xff]
    %v73 = vld [vmem:[%s2] sm:$0x1]
    %v75 = vperm.slane %v73, 0
    %vm77 = vcmask 261120
    %v79 = vsel %vm77, %v66, 0
    %v82 = vsel %vm77, %v67, 0
    %v85 = vsel %vm77, %v68, 0
    %87 = vmatpush.msra.mxu0 0.0
    %88 = vmatpush.msra.mxu0 0.0
    %89 = vmatpush.msra.mxu0 0.0
    %90 = vmatpush.msra.mxu0 0.0
    %91 = vmatpush.msra.mxu0 0.0
    %92 = vmatpush.msra.mxu0 0.0
    %93 = vmatpush.msra.mxu0 0.0
    %94 = vmatpush.msra.mxu0 0.0
    %95 = vmatpush.msra.mxu0 0.0
    %96 = vmatpush.msra.mxu0 0.0
    %97 = vmatpush.msra.mxu0 0.0
    %98 = vmatpush.msra.mxu0 0.0
    %99 = vmatpush.msra.mxu0 %v72
    %100 = vmatpush.msra.mxu0 %v71
    %101 = vmatpush.msra.mxu0 %v70
    %102 = vmatpush.msra.mxu0 %v69
    %103 = vmatmul.f32.gmra.mxu0 %v79
    %v104 = vpop.f32.mrf.mxu0
    %v105 = vadd.f32 %v75, %v104
    %106 = vmatmul.f32.gmra.mxu0 %v82
    %v107 = vpop.f32.mrf.mxu0
    %v108 = vadd.f32 %v75, %v107
    %109 = vmatmul.f32.gmra.mxu0 %v85
    %v110 = vpop.f32.mrf.mxu0
    %v111 = vadd.f32 %v75, %v110
    %112 = vdwg.mxu0
    %v113 = vtanh.pop %v105
    %v114 = vtanh.pop %v108
    %v115 = vtanh.pop %v111
    %v116 = vld [vmem:[#allocation7] sm:$0x7]
    %vm117 = vcmask 195584
    %v119 = vsel %vm117, %v116, 0
    %121 = vmatpush.msra.mxu0 0.0
    %122 = vmatpush.msra.mxu0 0.0
    %123 = vmatpush.msra.mxu0 0.0
    %124 = vmatpush.msra.mxu0 0.0
    %125 = vmatpush.msra.mxu0 0.0
    %126 = vmatpush.msra.mxu0 0.0
    %127 = vmatpush.msra.mxu0 0.0
    %128 = vmatpush.msra.mxu0 0.0
    %129 = vmatpush.msra.mxu0 0.0
    %130 = vmatpush.msra.mxu0 0.0
    %131 = vmatpush.msra.mxu0 0.0
    %132 = vmatpush.msra.mxu0 0.0
    %133 = vmatpush.msra.mxu0 0.0
    %134 = vmatpush.msra.mxu0 %v115
    %135 = vmatpush.msra.mxu0 %v114
    %136 = vmatpush.msra.mxu0 %v113
    %137 = vmatmul.f32.gmra.mxu0 %v119
    %v138 = vpop.f32.mrf.mxu0
    %v139 = vadd.f32 0.0, %v138
    %140 = vdwg.mxu0
    %v141 = vld [vmem:[%s3] sm:$0x1]
    %v143 = vperm.slane %v141, 0
    %v145 = vmul.f32 %v139, %v143
    %vm146 = vcmask 256000
    %v147 = vsel %vm146, %v145, 0.0
    %148 = vadd.xlane.f32.xlu0 %v147
    %v149 = vpop.xlane.xlu0 %148
    %v150 = vmul.f32 %v149, 0.125
    %v152 = vrot.slane %v150, 1
    %v154 = vmax.f32 %v150, %v152
    %v155 = vrot.slane %v150, 2
    %v157 = vmax.f32 %v154, %v155
    %v158 = vsub.f32 %v150, %v157
    %v159 = vmul.f32 %v158, 1.442695
    %v160 = vpow.pop %v159
    %v162 = vrot.slane %v157, 7
    %v164 = vsub.f32 %v150, %v162
    %v165 = vmul.f32 %v164, 1.442695
    %v166 = vpow.pop %v165
    %v167 = vrot.slane %v157, 6
    %v169 = vsub.f32 %v150, %v167
    %v170 = vmul.f32 %v169, 1.442695
    %v171 = vpow.pop %v170
    %v173 = vrot.slane %v166, 1
    %v175 = vadd.f32 %v160, %v173
    %v177 = vrot.slane %v171, 2
    %v179 = vadd.f32 %v175, %v177
    %v180 = vrcp.pop %v179
    %v181 = vmul.f32 %v179, %v180
    %v182 = vsub.f32 1.0, %v181
    %v183 = vmul.f32 %v180, %v182
    %v184 = vadd.f32 %v180, %v183
    %vm185 = vweird.f32 %v179
    %vm186 = vweird.f32 %v180
    %vm187 = vmor %vm185, %vm186
    %v188 = vsel %vm187, %v180, %v184
    %v189 = vand.u32 2147483647, %v179
    %vm190 = vcmp.eq.f32.partialorder %v189, 8.507059e+37
    %v191 = vand.u32 %v179, 2147483648
    %v192 = vor.u32 1.1754944e-38, %v191
    %v193 = vsel %vm190, %v192, %v188
    %v194 = vmul.f32 1.0, %v193
    %v195 = vmul.f32 %v160, %v194
    %197 = vset.pattern.permute.xlu0 0
    %198 = vperm.xlu0 %197, %v195
    %v199 = vpop.permute.xlu0 %198
    %v201 = vadd.f32 %v199, 0.0
    %v202 = vld [vmem:[#allocation2] sm:$0xff]
    %v203 = vperm.slane %v201, 0
    %v204 = vmul.f32 %v202, %v203
    %v206 = vrot.slane %v194, 7
    %v208 = vmul.f32 %v166, %v206
    %210 = vset.pattern.permute.xlu0 0
    %211 = vperm.xlu0 %210, %v208
    %v212 = vpop.permute.xlu0 %211
    %v214 = vadd.f32 %v212, 0.0
    %s215 = scalar_lea.vmem [#allocation2], 8
    %v216 = vld [vmem:[%s215] sm:$0xff]
    %v217 = vperm.slane %v214, 1
    %v218 = vmul.f32 %v216, %v217
    %v219 = vadd.f32 %v204, %v218
    %v220 = vrot.slane %v194, 6
    %v222 = vmul.f32 %v171, %v220
    %224 = vset.pattern.permute.xlu0 0
    %225 = vperm.xlu0 %224, %v222
    %v226 = vpop.permute.xlu0 %225
    %v228 = vadd.f32 %v226, 0.0
    %s229 = scalar_lea.vmem [#allocation2], 16
    %v230 = vld [vmem:[%s229] sm:$0xff]
    %v231 = vperm.slane %v228, 2
    %v232 = vmul.f32 %v230, %v231
    %v233 = vadd.f32 %v219, %v232
    %234 = vst.msk [vmem:[#allocation8] sm:$0xff] %vm77, %v233
    // Predicated region
    $region34: #{tpu_custom_call.1} parent=1 // pred_check
      _
    $region35: #{tpu_custom_call.1} parent=1 // pred_check_branch
      %236 = sbr.rel (0) target = $region37
    $region36: #{tpu_custom_call.1} parent=1 // pred_region
      %238 = vsyncadd [#allocation4], 0
      %s240 = sshll.u32 [#allocation8], 4
      %s241 = int_to_ptr.vmem [resolvable:$true] %s240
      %s242 = sshll.u32 %s5, 4
      %s243 = int_to_ptr.hbm [resolvable:$true] %s242
      %245 = dma.vmem_to_hbm [thread:$0]  %s241, 128, %s243, [#allocation4]
    $region37: #{tpu_custom_call.1} parent=1 // pred_fallthru
      _
    // Predicated region
    $region38: #{tpu_custom_call.1} parent=1 // pred_check
      _
    $region39: #{tpu_custom_call.1} parent=1 // pred_check_branch
      %247 = sbr.rel (0) target = $region41
    $region40: #{tpu_custom_call.1} parent=1 // pred_region
      %249 = dma.done [#allocation4], 128
    $region41: #{tpu_custom_call.1} parent=1 // pred_fallthru
      _
    %250 = vsyncpa [#allocation3], 1
    %251 = vsyncpa [#allocation6], 1
    %252 = vsyncpa [#allocation4], 1

</llo_original>
